<compile_context>
chip_gen: v6e
topology: v6e:2x2x1
jax: 0.10.0
libtpu: 0.0.40
codegen_flags: <defaults>
</compile_context>

<pallas_src>
import jax
import jax.numpy as jnp
from jax.experimental import pallas as pl
from jax.experimental.pallas import tpu as pltpu

EPS = 1e-5
LANES = 128

# Row layout of the packed "vector" slab (V_ROWS, 128).
R_W1_0, R_W1_1 = 0, 1
R_B1, R_G1, R_BE1 = 2, 3, 4
R_B2, R_G2, R_BE2 = 5, 6, 7
R_B3, R_G3, R_BE3 = 8, 9, 10
R_W4, R_B4 = 11, 12
V_ROWS = 16

# Weight slab (W_ROWS, 128): rows [0,128) = zero-padded w2 (64x32),
#                            rows [128,256) = zero-padded w3 (32x16).
W_ROWS = 256

# Gridless-call row ceiling.  Budget ~2 KiB/row of live VMEM (padded input tile,
# two live (N,128) f32 intermediates, output) + 136 KiB of slabs; 8192 rows
# stays well under the 32 MiB scoped limit used below on every generation
# (v5e default 16 MiB, v6e/v7x default 32 MiB, v7x physical 64 MiB).
MAX_ROWS_PER_CALL = 8192
VMEM_LIMIT_BYTES = 32 * 1024 * 1024


def mlp_kernel(x_ref, w_ref, v_ref, o_ref):
    x = x_ref[...]  # (N, 2)

    def vrow(r):
        return v_ref[r:r + 1, :]  # (1, 128) static sublane slice

    def bn_fused(h, g, be):
        # Training-mode BatchNorm1d: biased batch statistics, folded into a
        # single scale/shift.  sum(h) and sum(h*h) are independent reductions.
        # NOTE: one-pass E[x^2]-E[x]^2 form is fine for f32 at ~2e-3 tolerance;
        # use a two-pass form if activations move to bf16.
        inv_n = 1.0 / h.shape[0]
        mean = jnp.sum(h, axis=0, keepdims=True) * inv_n
        msq = jnp.sum(h * h, axis=0, keepdims=True) * inv_n
        var = jnp.maximum(msq - mean * mean, 0.0)
        scale = g * jax.lax.rsqrt(var + EPS)  # keep EPS inside the rsqrt (EUP)
        shift = be - mean * scale
        return h * scale + shift

    # ---- Layer 1: (K=2) Linear done on the VPU (no MXU round trip) ----
    h = (x[:, 0:1] * vrow(R_W1_0)
         + x[:, 1:2] * vrow(R_W1_1)
         + vrow(R_B1))
    h = jnp.maximum(h, 0.0)
    h = bn_fused(h, vrow(R_G1), vrow(R_BE1))

    # ---- Layer 2: 64 -> 32 on the MXU (zero-padded to 128x128) ----
    h = jnp.dot(h, w_ref[0:128, :], preferred_element_type=jnp.float32) + vrow(R_B2)
    h = jnp.maximum(h, 0.0)
    h = bn_fused(h, vrow(R_G2), vrow(R_BE2))

    # ---- Layer 3: 32 -> 16 on the MXU (zero-padded to 128x128) ----
    h = jnp.dot(h, w_ref[128:256, :], preferred_element_type=jnp.float32) + vrow(R_B3)
    h = jnp.maximum(h, 0.0)
    h = bn_fused(h, vrow(R_G3), vrow(R_BE3))

    # ---- Layer 4: 16 -> 1 as an XLU lane reduction (no MXU) ----
    y = jnp.sum(h * vrow(R_W4), axis=1, keepdims=True)  # (N, 1)
    b4 = v_ref[R_B4:R_B4 + 1, 0:1]                      # (1, 1) scalar slice
    o_ref[...] = y + b4                                  # (N, 1) store


def pack_params(params):
    """Host-side (run ONCE): pack the 14 tiny parameter tensors into two slabs.

    Zero-padding of gamma/beta/bias rows beyond the real feature width is what
    keeps the padded lanes exactly zero through the fused BN (scale=shift=0);
    do not change it to ones.
    """
    (w1, b1, g1, be1, w2, b2, g2, be2, w3, b3, g3, be3, w4, b4) = [
        jnp.asarray(p, jnp.float32) for p in params]

    d_in, h1 = w1.shape
    h2 = w2.shape[1]
    h3 = w3.shape[1]
    assert d_in == 2, "layer-1 VPU form assumes input_dim == 2"
    assert max(h1, h2, h3) <= LANES and w2.shape[0] <= 128 and w3.shape[0] <= 128

    wslab = jnp.zeros((W_ROWS, LANES), jnp.float32)
    wslab = wslab.at[0:w2.shape[0], 0:h2].set(w2)
    wslab = wslab.at[128:128 + w3.shape[0], 0:h3].set(w3)

    def row(vec, width):
        r = jnp.zeros((LANES,), jnp.float32)
        return r.at[0:width].set(vec.reshape(-1))

    rows = [
        row(w1[0], h1), row(w1[1], h1),
        row(b1, h1), row(g1, h1), row(be1, h1),
        row(b2, h2), row(g2, h2), row(be2, h2),
        row(b3, h3), row(g3, h3), row(be3, h3),
        row(w4[:, 0], h3),
        row(b4, 1),
    ]
    rows += [jnp.zeros((LANES,), jnp.float32)] * (V_ROWS - len(rows))
    vslab = jnp.stack(rows)
    return wslab, vslab


def function_model_forward(x, packed):
    wslab, vslab = packed
    n, d_in = x.shape
    assert d_in == 2
    assert n <= MAX_ROWS_PER_CALL, (
        "gridless design: split/stack batches of <= MAX_ROWS_PER_CALL rows")

    x = x.astype(jnp.float32)

    flops = 2 * n * (2 * 64 + 64 * 32 + 32 * 16 + 16 * 1)
    bytes_accessed = 4 * (n * d_in + W_ROWS * LANES + V_ROWS * LANES + n * 1)

    out = pl.pallas_call(
        mlp_kernel,
        out_shape=jax.ShapeDtypeStruct((n, 1), jnp.float32),
        compiler_params=pltpu.CompilerParams(vmem_limit_bytes=VMEM_LIMIT_BYTES),
        cost_estimate=pl.CostEstimate(
            flops=flops, transcendentals=3 * LANES, bytes_accessed=bytes_accessed),
    )(x, wslab, vslab)
    return out


def init_params(key, input_dim=2, hidden_dims=(64, 32, 16), output_dim=1):
    """Deterministic init mimicking nn.Linear (uniform +-1/sqrt(fan_in)) and
    BatchNorm1d (gamma=1, beta=0). Weights stored as (in, out)."""
    params = []
    prev = input_dim
    for h in hidden_dims:
        key, kw, kb = jax.random.split(key, 3)
        bound = 1.0 / jnp.sqrt(prev)
        w = jax.random.uniform(kw, (prev, h), jnp.float32, -bound, bound)
        b = jax.random.uniform(kb, (1, h), jnp.float32, -bound, bound)
        gamma = jnp.ones((1, h), jnp.float32)
        beta = jnp.zeros((1, h), jnp.float32)
        params += [w, b, gamma, beta]
        prev = h
    key, kw, kb = jax.random.split(key, 3)
    bound = 1.0 / jnp.sqrt(prev)
    w = jax.random.uniform(kw, (prev, output_dim), jnp.float32, -bound, bound)
    b = jax.random.uniform(kb, (1, output_dim), jnp.float32, -bound, bound)
    params += [w, b]
    return tuple(params)


def reference_forward(x, params):
    (w1, b1, g1, be1, w2, b2, g2, be2, w3, b3, g3, be3, w4, b4) = params

    def bn(h, g, be):
        mean = jnp.mean(h, axis=0, keepdims=True)
        var = jnp.mean((h - mean) ** 2, axis=0, keepdims=True)
        return (h - mean) * jax.lax.rsqrt(var + EPS) * g + be

    h = jnp.maximum(x @ w1 + b1, 0.0); h = bn(h, g1, be1)
    h = jnp.maximum(h @ w2 + b2, 0.0); h = bn(h, g2, be2)
    h = jnp.maximum(h @ w3 + b3, 0.0); h = bn(h, g3, be3)
    return h @ w4 + b4


if __name__ == "__main__":
    key = jax.random.PRNGKey(0)
    key, kx, kp = jax.random.split(key, 3)

    batch = 8
    input_dim = 2
    x = jax.random.normal(kx, (batch, input_dim), jnp.float32)
    params = init_params(kp, input_dim=input_dim,
                         hidden_dims=(64, 32, 16), output_dim=1)

    packed = pack_params(params)      # pack once, reuse across calls
    out = function_model_forward(x, packed)
    jax.block_until_ready(out)
    assert out.shape == (batch, 1)

    ref = reference_forward(x, params)
    assert bool(jnp.all(jnp.isfinite(out)))
    assert bool(jnp.allclose(out, ref, atol=2e-3, rtol=2e-3))

    print("KERNEL_OK")
</pallas_src>

<mosaic_0001>
module attributes {stable_mosaic.version = 11 : i64} {
  func.func @mlp_kernel(%arg0: memref<8x2xf32, #tpu.memory_space<vmem>>, %arg1: memref<256x128xf32, #tpu.memory_space<vmem>>, %arg2: memref<16x128xf32, #tpu.memory_space<vmem>>, %arg3: memref<8x1xf32, #tpu.memory_space<vmem>>) attributes {dimension_semantics = [], scalar_prefetch = 0 : i64, scratch_operands = 0 : i64, tpu.core_type = #tpu.core_type<tc>} {
    %c0 = arith.constant 0 : index
    %c0_0 = arith.constant 0 : index
    %0 = vector.load %arg0[%c0, %c0_0] : memref<8x2xf32, #tpu.memory_space<vmem>>, vector<8x2xf32>
    %1 = vector.extract_strided_slice %0 {offsets = [0, 0], sizes = [8, 1], strides = [1, 1]} : vector<8x2xf32> to vector<8x1xf32>
    %c0_1 = arith.constant 0 : index
    %c0_2 = arith.constant 0 : index
    %2 = vector.load %arg2[%c0_1, %c0_2] : memref<16x128xf32, #tpu.memory_space<vmem>>, vector<1x128xf32>
    %3 = vector.broadcast %1 : vector<8x1xf32> to vector<8x128xf32>
    %4 = vector.broadcast %2 : vector<1x128xf32> to vector<8x128xf32>
    %5 = arith.mulf %3, %4 : vector<8x128xf32>
    %6 = vector.extract_strided_slice %0 {offsets = [0, 1], sizes = [8, 1], strides = [1, 1]} : vector<8x2xf32> to vector<8x1xf32>
    %c1 = arith.constant 1 : index
    %c0_3 = arith.constant 0 : index
    %7 = vector.load %arg2[%c1, %c0_3] : memref<16x128xf32, #tpu.memory_space<vmem>>, vector<1x128xf32>
    %8 = vector.broadcast %6 : vector<8x1xf32> to vector<8x128xf32>
    %9 = vector.broadcast %7 : vector<1x128xf32> to vector<8x128xf32>
    %10 = arith.mulf %8, %9 : vector<8x128xf32>
    %11 = arith.addf %5, %10 : vector<8x128xf32>
    %c2 = arith.constant 2 : index
    %c0_4 = arith.constant 0 : index
    %12 = vector.load %arg2[%c2, %c0_4] : memref<16x128xf32, #tpu.memory_space<vmem>>, vector<1x128xf32>
    %13 = vector.broadcast %12 : vector<1x128xf32> to vector<8x128xf32>
    %14 = arith.addf %11, %13 : vector<8x128xf32>
    %cst = arith.constant 0.000000e+00 : f32
    %15 = vector.broadcast %cst : f32 to vector<8x128xf32>
    %16 = arith.maximumf %14, %15 : vector<8x128xf32>
    %c3 = arith.constant 3 : index
    %c0_5 = arith.constant 0 : index
    %17 = vector.load %arg2[%c3, %c0_5] : memref<16x128xf32, #tpu.memory_space<vmem>>, vector<1x128xf32>
    %c4 = arith.constant 4 : index
    %c0_6 = arith.constant 0 : index
    %18 = vector.load %arg2[%c4, %c0_6] : memref<16x128xf32, #tpu.memory_space<vmem>>, vector<1x128xf32>
    %cst_7 = arith.constant dense<0.000000e+00> : vector<128xf32>
    %19 = vector.multi_reduction <add>, %16, %cst_7 [0] : vector<8x128xf32> to vector<128xf32>
    %20 = vector.shape_cast %19 : vector<128xf32> to vector<1x128xf32>
    %cst_8 = arith.constant 1.250000e-01 : f32
    %21 = vector.broadcast %cst_8 : f32 to vector<1x128xf32>
    %22 = arith.mulf %20, %21 : vector<1x128xf32>
    %23 = arith.mulf %16, %16 : vector<8x128xf32>
    %cst_9 = arith.constant dense<0.000000e+00> : vector<128xf32>
    %24 = vector.multi_reduction <add>, %23, %cst_9 [0] : vector<8x128xf32> to vector<128xf32>
    %25 = vector.shape_cast %24 : vector<128xf32> to vector<1x128xf32>
    %cst_10 = arith.constant 1.250000e-01 : f32
    %26 = vector.broadcast %cst_10 : f32 to vector<1x128xf32>
    %27 = arith.mulf %25, %26 : vector<1x128xf32>
    %28 = arith.mulf %22, %22 : vector<1x128xf32>
    %29 = arith.subf %27, %28 : vector<1x128xf32>
    %cst_11 = arith.constant 0.000000e+00 : f32
    %30 = vector.broadcast %cst_11 : f32 to vector<1x128xf32>
    %31 = arith.maximumf %29, %30 : vector<1x128xf32>
    %cst_12 = arith.constant 9.99999974E-6 : f32
    %32 = vector.broadcast %cst_12 : f32 to vector<1x128xf32>
    %33 = arith.addf %31, %32 : vector<1x128xf32>
    %34 = math.rsqrt %33 : vector<1x128xf32>
    %35 = arith.mulf %17, %34 : vector<1x128xf32>
    %36 = arith.mulf %22, %35 : vector<1x128xf32>
    %37 = arith.subf %18, %36 : vector<1x128xf32>
    %38 = vector.broadcast %35 : vector<1x128xf32> to vector<8x128xf32>
    %39 = arith.mulf %16, %38 : vector<8x128xf32>
    %40 = vector.broadcast %37 : vector<1x128xf32> to vector<8x128xf32>
    %41 = arith.addf %39, %40 : vector<8x128xf32>
    %c0_13 = arith.constant 0 : index
    %c0_14 = arith.constant 0 : index
    %42 = vector.load %arg1[%c0_13, %c0_14] : memref<256x128xf32, #tpu.memory_space<vmem>>, vector<128x128xf32>
    %cst_15 = arith.constant dense<0.000000e+00> : vector<8x128xf32>
    %43 = tpu.matmul %41, %42, %cst_15 {dimension_numbers = #tpu.dot_dimension_numbers<[1], [0], [0], [1], [0, 0, 1, 1], [], []>} : vector<8x128xf32>, vector<128x128xf32>, vector<8x128xf32> -> vector<8x128xf32>
    %c5 = arith.constant 5 : index
    %c0_16 = arith.constant 0 : index
    %44 = vector.load %arg2[%c5, %c0_16] : memref<16x128xf32, #tpu.memory_space<vmem>>, vector<1x128xf32>
    %45 = vector.broadcast %44 : vector<1x128xf32> to vector<8x128xf32>
    %46 = arith.addf %43, %45 : vector<8x128xf32>
    %cst_17 = arith.constant 0.000000e+00 : f32
    %47 = vector.broadcast %cst_17 : f32 to vector<8x128xf32>
    %48 = arith.maximumf %46, %47 : vector<8x128xf32>
    %c6 = arith.constant 6 : index
    %c0_18 = arith.constant 0 : index
    %49 = vector.load %arg2[%c6, %c0_18] : memref<16x128xf32, #tpu.memory_space<vmem>>, vector<1x128xf32>
    %c7 = arith.constant 7 : index
    %c0_19 = arith.constant 0 : index
    %50 = vector.load %arg2[%c7, %c0_19] : memref<16x128xf32, #tpu.memory_space<vmem>>, vector<1x128xf32>
    %cst_20 = arith.constant dense<0.000000e+00> : vector<128xf32>
    %51 = vector.multi_reduction <add>, %48, %cst_20 [0] : vector<8x128xf32> to vector<128xf32>
    %52 = vector.shape_cast %51 : vector<128xf32> to vector<1x128xf32>
    %cst_21 = arith.constant 1.250000e-01 : f32
    %53 = vector.broadcast %cst_21 : f32 to vector<1x128xf32>
    %54 = arith.mulf %52, %53 : vector<1x128xf32>
    %55 = arith.mulf %48, %48 : vector<8x128xf32>
    %cst_22 = arith.constant dense<0.000000e+00> : vector<128xf32>
    %56 = vector.multi_reduction <add>, %55, %cst_22 [0] : vector<8x128xf32> to vector<128xf32>
    %57 = vector.shape_cast %56 : vector<128xf32> to vector<1x128xf32>
    %cst_23 = arith.constant 1.250000e-01 : f32
    %58 = vector.broadcast %cst_23 : f32 to vector<1x128xf32>
    %59 = arith.mulf %57, %58 : vector<1x128xf32>
    %60 = arith.mulf %54, %54 : vector<1x128xf32>
    %61 = arith.subf %59, %60 : vector<1x128xf32>
    %cst_24 = arith.constant 0.000000e+00 : f32
    %62 = vector.broadcast %cst_24 : f32 to vector<1x128xf32>
    %63 = arith.maximumf %61, %62 : vector<1x128xf32>
    %cst_25 = arith.constant 9.99999974E-6 : f32
    %64 = vector.broadcast %cst_25 : f32 to vector<1x128xf32>
    %65 = arith.addf %63, %64 : vector<1x128xf32>
    %66 = math.rsqrt %65 : vector<1x128xf32>
    %67 = arith.mulf %49, %66 : vector<1x128xf32>
    %68 = arith.mulf %54, %67 : vector<1x128xf32>
    %69 = arith.subf %50, %68 : vector<1x128xf32>
    %70 = vector.broadcast %67 : vector<1x128xf32> to vector<8x128xf32>
    %71 = arith.mulf %48, %70 : vector<8x128xf32>
    %72 = vector.broadcast %69 : vector<1x128xf32> to vector<8x128xf32>
    %73 = arith.addf %71, %72 : vector<8x128xf32>
    %c128 = arith.constant 128 : index
    %c0_26 = arith.constant 0 : index
    %74 = vector.load %arg1[%c128, %c0_26] : memref<256x128xf32, #tpu.memory_space<vmem>>, vector<128x128xf32>
    %cst_27 = arith.constant dense<0.000000e+00> : vector<8x128xf32>
    %75 = tpu.matmul %73, %74, %cst_27 {dimension_numbers = #tpu.dot_dimension_numbers<[1], [0], [0], [1], [0, 0, 1, 1], [], []>} : vector<8x128xf32>, vector<128x128xf32>, vector<8x128xf32> -> vector<8x128xf32>
    %c8 = arith.constant 8 : index
    %c0_28 = arith.constant 0 : index
    %76 = vector.load %arg2[%c8, %c0_28] : memref<16x128xf32, #tpu.memory_space<vmem>>, vector<1x128xf32>
    %77 = vector.broadcast %76 : vector<1x128xf32> to vector<8x128xf32>
    %78 = arith.addf %75, %77 : vector<8x128xf32>
    %cst_29 = arith.constant 0.000000e+00 : f32
    %79 = vector.broadcast %cst_29 : f32 to vector<8x128xf32>
    %80 = arith.maximumf %78, %79 : vector<8x128xf32>
    %c9 = arith.constant 9 : index
    %c0_30 = arith.constant 0 : index
    %81 = vector.load %arg2[%c9, %c0_30] : memref<16x128xf32, #tpu.memory_space<vmem>>, vector<1x128xf32>
    %c10 = arith.constant 10 : index
    %c0_31 = arith.constant 0 : index
    %82 = vector.load %arg2[%c10, %c0_31] : memref<16x128xf32, #tpu.memory_space<vmem>>, vector<1x128xf32>
    %cst_32 = arith.constant dense<0.000000e+00> : vector<128xf32>
    %83 = vector.multi_reduction <add>, %80, %cst_32 [0] : vector<8x128xf32> to vector<128xf32>
    %84 = vector.shape_cast %83 : vector<128xf32> to vector<1x128xf32>
    %cst_33 = arith.constant 1.250000e-01 : f32
    %85 = vector.broadcast %cst_33 : f32 to vector<1x128xf32>
    %86 = arith.mulf %84, %85 : vector<1x128xf32>
    %87 = arith.mulf %80, %80 : vector<8x128xf32>
    %cst_34 = arith.constant dense<0.000000e+00> : vector<128xf32>
    %88 = vector.multi_reduction <add>, %87, %cst_34 [0] : vector<8x128xf32> to vector<128xf32>
    %89 = vector.shape_cast %88 : vector<128xf32> to vector<1x128xf32>
    %cst_35 = arith.constant 1.250000e-01 : f32
    %90 = vector.broadcast %cst_35 : f32 to vector<1x128xf32>
    %91 = arith.mulf %89, %90 : vector<1x128xf32>
    %92 = arith.mulf %86, %86 : vector<1x128xf32>
    %93 = arith.subf %91, %92 : vector<1x128xf32>
    %cst_36 = arith.constant 0.000000e+00 : f32
    %94 = vector.broadcast %cst_36 : f32 to vector<1x128xf32>
    %95 = arith.maximumf %93, %94 : vector<1x128xf32>
    %cst_37 = arith.constant 9.99999974E-6 : f32
    %96 = vector.broadcast %cst_37 : f32 to vector<1x128xf32>
    %97 = arith.addf %95, %96 : vector<1x128xf32>
    %98 = math.rsqrt %97 : vector<1x128xf32>
    %99 = arith.mulf %81, %98 : vector<1x128xf32>
    %100 = arith.mulf %86, %99 : vector<1x128xf32>
    %101 = arith.subf %82, %100 : vector<1x128xf32>
    %102 = vector.broadcast %99 : vector<1x128xf32> to vector<8x128xf32>
    %103 = arith.mulf %80, %102 : vector<8x128xf32>
    %104 = vector.broadcast %101 : vector<1x128xf32> to vector<8x128xf32>
    %105 = arith.addf %103, %104 : vector<8x128xf32>
    %c11 = arith.constant 11 : index
    %c0_38 = arith.constant 0 : index
    %106 = vector.load %arg2[%c11, %c0_38] : memref<16x128xf32, #tpu.memory_space<vmem>>, vector<1x128xf32>
    %107 = vector.broadcast %106 : vector<1x128xf32> to vector<8x128xf32>
    %108 = arith.mulf %105, %107 : vector<8x128xf32>
    %cst_39 = arith.constant dense<0.000000e+00> : vector<8xf32>
    %109 = vector.multi_reduction <add>, %108, %cst_39 [1] : vector<8x128xf32> to vector<8xf32>
    %110 = vector.shape_cast %109 : vector<8xf32> to vector<8x1xf32>
    %c12 = arith.constant 12 : index
    %c0_40 = arith.constant 0 : index
    %111 = vector.load %arg2[%c12, %c0_40] : memref<16x128xf32, #tpu.memory_space<vmem>>, vector<1x1xf32>
    %112 = vector.broadcast %111 : vector<1x1xf32> to vector<8x1xf32>
    %113 = arith.addf %110, %112 : vector<8x1xf32>
    %c0_41 = arith.constant 0 : index
    %c0_42 = arith.constant 0 : index
    %114 = vector.load %arg3[%c0_41, %c0_42] : memref<8x1xf32, #tpu.memory_space<vmem>>, vector<8x1xf32>
    tpu.vector_store %arg3[%c0_41, %c0_42], %113 {strides = array<i32>} : memref<8x1xf32, #tpu.memory_space<vmem>>, vector<8x1xf32>,
    return
  }
}

</mosaic_0001>

<llo_original>
// kernel: tpu_custom_call.1
$region0: #{tpu_custom_call.1}
  #allocation0 [shape = 'u32[]', space=smem, size = 0x4, offset = 0x4, fixed_abs, tag = 'smem constant byte address 0x4 - core index']
  #allocation1 [shape = 'u32[144,128]{1,0:T(1,128)}', space=vmem, size = 0x12000, scoped, tag = 'internal scratch']
  %s0 = inlined_call_operand.vmem [shape: f32[8,2], index: 0, kind: input, shape index: {}]
  %s1 = inlined_call_operand.hbm [shape: f32[256,128], index: 1, kind: input, shape index: {}]
  %s2 = inlined_call_operand.hbm [shape: f32[16,128], index: 2, kind: input, shape index: {}]
  %s3 = inlined_call_operand.vmem [shape: f32[8,1], index: 3, kind: output, shape index: {}]
  %s4 = sld [smem:[#allocation0]]
  $region30: #{tpu_custom_call.1} parent=0
    _
  %s6 = ssub.s32 1, %s4
  %s7 = scalar_select 0, %s6, %s4
  $region1: #{tpu_custom_call.1} parent=0
    #allocation2 [shape = 'u8[131072]{0}', space=vmem, size = 0x20000, scoped, tag = 'input window, operand 1, single buffered']
    #allocation3 [shape = 's32[1]{0}', space=sflag, size = 0x4, scoped, tag = 'scoped memory for tpu_custom_call.1']
    #allocation4 [shape = 'u8[8192]{0}', space=vmem, size = 0x2000, scoped, tag = 'input window, operand 2, single buffered']
    #allocation5 [shape = 's32[1]{0}', space=sflag, size = 0x4, scoped, tag = 'scoped memory for tpu_custom_call.1']
    %8 = vsyncpa [#allocation3], 0
    %9 = vsyncpa [#allocation5], 0
    // Predicated region
    $region2: #{tpu_custom_call.1} parent=1 // pred_check
      _
    $region3: #{tpu_custom_call.1} parent=1 // pred_check_branch
      %11 = sbr.rel (0) target = $region5
    $region4: #{tpu_custom_call.1} parent=1 // pred_region
      _
    $region5: #{tpu_custom_call.1} parent=1 // pred_fallthru
      _
    // Predicated region
    $region6: #{tpu_custom_call.1} parent=1 // pred_check
      _
    $region7: #{tpu_custom_call.1} parent=1 // pred_check_branch
      %13 = sbr.rel (0) target = $region9
    $region8: #{tpu_custom_call.1} parent=1 // pred_region
      %s15 = ssub.s32 4096, 4096
      %16 = vsyncadd [#allocation3], %s15
      %s17 = sshll.u32 [#allocation2], 4
      %s18 = int_to_ptr.vmem [resolvable:$true] %s17
      %23 = dma.hbm_to_vmem [thread:$0]  %s1, 4096, %s18, [#allocation3], 128, 128, 8
    $region9: #{tpu_custom_call.1} parent=1 // pred_fallthru
      _
    // Predicated region
    $region10: #{tpu_custom_call.1} parent=1 // pred_check
      _
    $region11: #{tpu_custom_call.1} parent=1 // pred_check_branch
      %25 = sbr.rel (0) target = $region13
    $region12: #{tpu_custom_call.1} parent=1 // pred_region
      %s27 = ssub.s32 256, 256
      %28 = vsyncadd [#allocation5], %s27
      %s29 = sshll.u32 [#allocation4], 4
      %s30 = int_to_ptr.vmem [resolvable:$true] %s29
      %35 = dma.hbm_to_vmem [thread:$0]  %s2, 256, %s30, [#allocation5], 128, 128, 8
    $region13: #{tpu_custom_call.1} parent=1 // pred_fallthru
      _
    // Predicated region
    $region14: #{tpu_custom_call.1} parent=1 // pred_check
      _
    $region15: #{tpu_custom_call.1} parent=1 // pred_check_branch
      %37 = sbr.rel (0) target = $region17
    $region16: #{tpu_custom_call.1} parent=1 // pred_region
      %38 = dma.done [#allocation3], 4096
    $region17: #{tpu_custom_call.1} parent=1 // pred_fallthru
      _
    // Predicated region
    $region18: #{tpu_custom_call.1} parent=1 // pred_check
      _
    $region19: #{tpu_custom_call.1} parent=1 // pred_check_branch
      %40 = sbr.rel (0) target = $region21
    $region20: #{tpu_custom_call.1} parent=1 // pred_region
      %41 = dma.done [#allocation5], 256
    $region21: #{tpu_custom_call.1} parent=1 // pred_fallthru
      _
    %v42 = vld [vmem:[%s0] sm:$0xff]
    %v43 = vld [vmem:[#allocation4] sm:$0x1]
    %45 = vset.pattern.permute.xlu0 0
    %46 = vperm.xlu0 %45, %v42
    %v47 = vpop.permute.xlu0 %46
    %v49 = vlaneseq
    %v50 = vshrl.u32 %v49, 7
    %v51 = vsub.s32 0, %v50
    %v52 = vrot.slane %v43, %v51
    %v53 = vmul.f32 %v47, %v52
    %v54 = vld [vmem:[#allocation4 + $0x1] sm:$0x1]
    %55 = vset.pattern.permute.xlu0 1
    %56 = vperm.xlu0 %55, %v42
    %v57 = vpop.permute.xlu0 %56
    %v59 = vlaneseq
    %v60 = vshrl.u32 %v59, 7
    %v61 = vsub.s32 0, %v60
    %v62 = vrot.slane %v54, %v61
    %v63 = vmul.f32 %v57, %v62
    %v64 = vadd.f32 %v53, %v63
    %v65 = vld [vmem:[#allocation4 + $0x2] sm:$0x1]
    %v66 = vlaneseq
    %v67 = vshrl.u32 %v66, 7
    %v68 = vsub.s32 0, %v67
    %v69 = vrot.slane %v65, %v68
    %v70 = vadd.f32 %v64, %v69
    %v71 = vmax.f32 %v70, 0.0
    %v72 = vld [vmem:[#allocation4 + $0x3] sm:$0x1]
    %v73 = vld [vmem:[#allocation4 + $0x4] sm:$0x1]
    %v74 = vrot.slane %v71, 4
    %v75 = vadd.f32 %v71, %v74
    %v76 = vrot.slane %v75, 2
    %v77 = vadd.f32 %v75, %v76
    %v78 = vrot.slane %v77, 1
    %v79 = vadd.f32 %v77, %v78
    %v80 = vmul.f32 %v79, 0.125
    %v81 = vmul.f32 %v71, %v71
    %v82 = vrot.slane %v81, 4
    %v83 = vadd.f32 %v81, %v82
    %v84 = vrot.slane %v83, 2
    %v85 = vadd.f32 %v83, %v84
    %v86 = vrot.slane %v85, 1
    %v87 = vadd.f32 %v85, %v86
    %v88 = vmul.f32 %v87, 0.125
    %v89 = vmul.f32 %v80, %v80
    %v90 = vsub.f32 %v88, %v89
    %v91 = vmax.f32 %v90, 0.0
    %v92 = vadd.f32 %v91, 1e-05
    %v93 = vrsqrt.pop %v92
    %v94 = vmul.f32 %v72, %v93
    %v95 = vmul.f32 %v80, %v94
    %v96 = vsub.f32 %v73, %v95
    %v97 = vlaneseq
    %v98 = vshrl.u32 %v97, 7
    %v99 = vsub.s32 0, %v98
    %v100 = vrot.slane %v94, %v99
    %v101 = vmul.f32 %v71, %v100
    %v102 = vlaneseq
    %v103 = vshrl.u32 %v102, 7
    %v104 = vsub.s32 0, %v103
    %v105 = vrot.slane %v96, %v104
    %v106 = vadd.f32 %v101, %v105
    %v107 = vld [vmem:[#allocation2] sm:$0xff]
    %v108 = vld [vmem:[#allocation2 + $0x8] sm:$0xff]
    %v109 = vld [vmem:[#allocation2 + $0x10] sm:$0xff]
    %v110 = vld [vmem:[#allocation2 + $0x18] sm:$0xff]
    %v111 = vld [vmem:[#allocation2 + $0x20] sm:$0xff]
    %v112 = vld [vmem:[#allocation2 + $0x28] sm:$0xff]
    %v113 = vld [vmem:[#allocation2 + $0x30] sm:$0xff]
    %v114 = vld [vmem:[#allocation2 + $0x38] sm:$0xff]
    %v115 = vld [vmem:[#allocation2 + $0x40] sm:$0xff]
    %v116 = vld [vmem:[#allocation2 + $0x48] sm:$0xff]
    %v117 = vld [vmem:[#allocation2 + $0x50] sm:$0xff]
    %v118 = vld [vmem:[#allocation2 + $0x58] sm:$0xff]
    %v119 = vld [vmem:[#allocation2 + $0x60] sm:$0xff]
    %v120 = vld [vmem:[#allocation2 + $0x68] sm:$0xff]
    %v121 = vld [vmem:[#allocation2 + $0x70] sm:$0xff]
    %v122 = vld [vmem:[#allocation2 + $0x78] sm:$0xff]
    %v123 = vld [vmem:[#allocation4 + $0x5] sm:$0x1]
    %v124 = vlaneseq
    %v125 = vshrl.u32 %v124, 7
    %v126 = vsub.s32 0, %v125
    %v127 = vrot.slane %v123, %v126
    %128 = vmatprep.subr.mxu0 0.0
    %129 = vmatpush1.msra.mxu0 %v122
    %130 = vmatprep.subr.mxu0 0.0
    %131 = vmatpush1.msra.mxu0 %v121
    %132 = vmatprep.subr.mxu0 0.0
    %133 = vmatpush1.msra.mxu0 %v120
    %134 = vmatprep.subr.mxu0 0.0
    %135 = vmatpush1.msra.mxu0 %v119
    %136 = vmatprep.subr.mxu0 0.0
    %137 = vmatpush1.msra.mxu0 %v118
    %138 = vmatprep.subr.mxu0 0.0
    %139 = vmatpush1.msra.mxu0 %v117
    %140 = vmatprep.subr.mxu0 0.0
    %141 = vmatpush1.msra.mxu0 %v116
    %142 = vmatprep.subr.mxu0 0.0
    %143 = vmatpush1.msra.mxu0 %v115
    %144 = vmatprep.subr.mxu0 0.0
    %145 = vmatpush1.msra.mxu0 %v114
    %146 = vmatprep.subr.mxu0 0.0
    %147 = vmatpush1.msra.mxu0 %v113
    %148 = vmatprep.subr.mxu0 0.0
    %149 = vmatpush1.msra.mxu0 %v112
    %150 = vmatprep.subr.mxu0 0.0
    %151 = vmatpush1.msra.mxu0 %v111
    %152 = vmatprep.subr.mxu0 0.0
    %153 = vmatpush1.msra.mxu0 %v110
    %154 = vmatprep.subr.mxu0 0.0
    %155 = vmatpush1.msra.mxu0 %v109
    %156 = vmatprep.subr.mxu0 0.0
    %157 = vmatpush1.msra.mxu0 %v108
    %158 = vmatprep.subr.mxu0 0.0
    %159 = vmatpush1.msra.mxu0 %v107
    %160 = vmatprep.subr.mxu0 0.0
    %161 = vmatpush2.msra.mxu0 0.0
    %162 = vmatprep.subr.mxu0 0.0
    %163 = vmatpush2.msra.mxu0 0.0
    %164 = vmatprep.subr.mxu0 0.0
    %165 = vmatpush2.msra.mxu0 0.0
    %166 = vmatprep.subr.mxu0 0.0
    %167 = vmatpush2.msra.mxu0 0.0
    %168 = vmatprep.subr.mxu0 0.0
    %169 = vmatpush2.msra.mxu0 0.0
    %170 = vmatprep.subr.mxu0 0.0
    %171 = vmatpush2.msra.mxu0 0.0
    %172 = vmatprep.subr.mxu0 0.0
    %173 = vmatpush2.msra.mxu0 0.0
    %174 = vmatprep.subr.mxu0 0.0
    %175 = vmatpush2.msra.mxu0 0.0
    %176 = vmatprep.subr.mxu0 0.0
    %177 = vmatpush2.msra.mxu0 0.0
    %178 = vmatprep.subr.mxu0 0.0
    %179 = vmatpush2.msra.mxu0 0.0
    %180 = vmatprep.subr.mxu0 0.0
    %181 = vmatpush2.msra.mxu0 0.0
    %182 = vmatprep.subr.mxu0 0.0
    %183 = vmatpush2.msra.mxu0 0.0
    %184 = vmatprep.subr.mxu0 0.0
    %185 = vmatpush2.msra.mxu0 0.0
    %186 = vmatprep.subr.mxu0 0.0
    %187 = vmatpush2.msra.mxu0 0.0
    %188 = vmatprep.subr.mxu0 0.0
    %189 = vmatpush2.msra.mxu0 0.0
    %190 = vmatprep.subr.mxu0 0.0
    %191 = vmatpush2.msra.mxu0 0.0
    %192 = vmatprep.mubr.f32.mxu0 0.0
    %193 = vmatmul.mubr.f32.gmra.mxu0 %v106
    %v194 = vpop.f32.mrf.mxu0
    %v195 = vadd.f32 %v127, %v194
    %v196 = vpop.f32.mrf.mxu0
    %197 = vdwg.mxu0
    %v198 = vmax.f32 %v195, 0.0
    %v199 = vld [vmem:[#allocation4 + $0x6] sm:$0x1]
    %v200 = vld [vmem:[#allocation4 + $0x7] sm:$0x1]
    %v201 = vrot.slane %v198, 4
    %v202 = vadd.f32 %v198, %v201
    %v203 = vrot.slane %v202, 2
    %v204 = vadd.f32 %v202, %v203
    %v205 = vrot.slane %v204, 1
    %v206 = vadd.f32 %v204, %v205
    %v207 = vmul.f32 %v206, 0.125
    %v208 = vmul.f32 %v198, %v198
    %v209 = vrot.slane %v208, 4
    %v210 = vadd.f32 %v208, %v209
    %v211 = vrot.slane %v210, 2
    %v212 = vadd.f32 %v210, %v211
    %v213 = vrot.slane %v212, 1
    %v214 = vadd.f32 %v212, %v213
    %v215 = vmul.f32 %v214, 0.125
    %v216 = vmul.f32 %v207, %v207
    %v217 = vsub.f32 %v215, %v216
    %v218 = vmax.f32 %v217, 0.0
    %v219 = vadd.f32 %v218, 1e-05
    %v220 = vrsqrt.pop %v219
    %v221 = vmul.f32 %v199, %v220
    %v222 = vmul.f32 %v207, %v221
    %v223 = vsub.f32 %v200, %v222
    %v224 = vlaneseq
    %v225 = vshrl.u32 %v224, 7
    %v226 = vsub.s32 0, %v225
    %v227 = vrot.slane %v221, %v226
    %v228 = vmul.f32 %v198, %v227
    %v229 = vlaneseq
    %v230 = vshrl.u32 %v229, 7
    %v231 = vsub.s32 0, %v230
    %v232 = vrot.slane %v223, %v231
    %v233 = vadd.f32 %v228, %v232
    %v234 = vld [vmem:[#allocation2 + $0x80] sm:$0xff]
    %v235 = vld [vmem:[#allocation2 + $0x88] sm:$0xff]
    %v236 = vld [vmem:[#allocation2 + $0x90] sm:$0xff]
    %v237 = vld [vmem:[#allocation2 + $0x98] sm:$0xff]
    %v238 = vld [vmem:[#allocation2 + $0xa0] sm:$0xff]
    %v239 = vld [vmem:[#allocation2 + $0xa8] sm:$0xff]
    %v240 = vld [vmem:[#allocation2 + $0xb0] sm:$0xff]
    %v241 = vld [vmem:[#allocation2 + $0xb8] sm:$0xff]
    %v242 = vld [vmem:[#allocation2 + $0xc0] sm:$0xff]
    %v243 = vld [vmem:[#allocation2 + $0xc8] sm:$0xff]
    %v244 = vld [vmem:[#allocation2 + $0xd0] sm:$0xff]
    %v245 = vld [vmem:[#allocation2 + $0xd8] sm:$0xff]
    %v246 = vld [vmem:[#allocation2 + $0xe0] sm:$0xff]
    %v247 = vld [vmem:[#allocation2 + $0xe8] sm:$0xff]
    %v248 = vld [vmem:[#allocation2 + $0xf0] sm:$0xff]
    %v249 = vld [vmem:[#allocation2 + $0xf8] sm:$0xff]
    %v250 = vld [vmem:[#allocation4 + $0x8] sm:$0x1]
    %v251 = vlaneseq
    %v252 = vshrl.u32 %v251, 7
    %v253 = vsub.s32 0, %v252
    %v254 = vrot.slane %v250, %v253
    %255 = vmatprep.subr.mxu0 0.0
    %256 = vmatpush1.msra.mxu0 %v249
    %257 = vmatprep.subr.mxu0 0.0
    %258 = vmatpush1.msra.mxu0 %v248
    %259 = vmatprep.subr.mxu0 0.0
    %260 = vmatpush1.msra.mxu0 %v247
    %261 = vmatprep.subr.mxu0 0.0
    %262 = vmatpush1.msra.mxu0 %v246
    %263 = vmatprep.subr.mxu0 0.0
    %264 = vmatpush1.msra.mxu0 %v245
    %265 = vmatprep.subr.mxu0 0.0
    %266 = vmatpush1.msra.mxu0 %v244
    %267 = vmatprep.subr.mxu0 0.0
    %268 = vmatpush1.msra.mxu0 %v243
    %269 = vmatprep.subr.mxu0 0.0
    %270 = vmatpush1.msra.mxu0 %v242
    %271 = vmatprep.subr.mxu0 0.0
    %272 = vmatpush1.msra.mxu0 %v241
    %273 = vmatprep.subr.mxu0 0.0
    %274 = vmatpush1.msra.mxu0 %v240
    %275 = vmatprep.subr.mxu0 0.0
    %276 = vmatpush1.msra.mxu0 %v239
    %277 = vmatprep.subr.mxu0 0.0
    %278 = vmatpush1.msra.mxu0 %v238
    %279 = vmatprep.subr.mxu0 0.0
    %280 = vmatpush1.msra.mxu0 %v237
    %281 = vmatprep.subr.mxu0 0.0
    %282 = vmatpush1.msra.mxu0 %v236
    %283 = vmatprep.subr.mxu0 0.0
    %284 = vmatpush1.msra.mxu0 %v235
    %285 = vmatprep.subr.mxu0 0.0
    %286 = vmatpush1.msra.mxu0 %v234
    %287 = vmatprep.subr.mxu0 0.0
    %288 = vmatpush2.msra.mxu0 0.0
    %289 = vmatprep.subr.mxu0 0.0
    %290 = vmatpush2.msra.mxu0 0.0
    %291 = vmatprep.subr.mxu0 0.0
    %292 = vmatpush2.msra.mxu0 0.0
    %293 = vmatprep.subr.mxu0 0.0
    %294 = vmatpush2.msra.mxu0 0.0
    %295 = vmatprep.subr.mxu0 0.0
    %296 = vmatpush2.msra.mxu0 0.0
    %297 = vmatprep.subr.mxu0 0.0
    %298 = vmatpush2.msra.mxu0 0.0
    %299 = vmatprep.subr.mxu0 0.0
    %300 = vmatpush2.msra.mxu0 0.0
    %301 = vmatprep.subr.mxu0 0.0
    %302 = vmatpush2.msra.mxu0 0.0
    %303 = vmatprep.subr.mxu0 0.0
    %304 = vmatpush2.msra.mxu0 0.0
    %305 = vmatprep.subr.mxu0 0.0
    %306 = vmatpush2.msra.mxu0 0.0
    %307 = vmatprep.subr.mxu0 0.0
    %308 = vmatpush2.msra.mxu0 0.0
    %309 = vmatprep.subr.mxu0 0.0
    %310 = vmatpush2.msra.mxu0 0.0
    %311 = vmatprep.subr.mxu0 0.0
    %312 = vmatpush2.msra.mxu0 0.0
    %313 = vmatprep.subr.mxu0 0.0
    %314 = vmatpush2.msra.mxu0 0.0
    %315 = vmatprep.subr.mxu0 0.0
    %316 = vmatpush2.msra.mxu0 0.0
    %317 = vmatprep.subr.mxu0 0.0
    %318 = vmatpush2.msra.mxu0 0.0
    %319 = vmatprep.mubr.f32.mxu0 0.0
    %320 = vmatmul.mubr.f32.gmra.mxu0 %v233
    %v321 = vpop.f32.mrf.mxu0
    %v322 = vadd.f32 %v254, %v321
    %v323 = vpop.f32.mrf.mxu0
    %324 = vdwg.mxu0
    %v325 = vmax.f32 %v322, 0.0
    %v326 = vld [vmem:[#allocation4 + $0x9] sm:$0x1]
    %v327 = vld [vmem:[#allocation4 + $0xa] sm:$0x1]
    %v328 = vrot.slane %v325, 4
    %v329 = vadd.f32 %v325, %v328
    %v330 = vrot.slane %v329, 2
    %v331 = vadd.f32 %v329, %v330
    %v332 = vrot.slane %v331, 1
    %v333 = vadd.f32 %v331, %v332
    %v334 = vmul.f32 %v333, 0.125
    %v335 = vmul.f32 %v325, %v325
    %v336 = vrot.slane %v335, 4
    %v337 = vadd.f32 %v335, %v336
    %v338 = vrot.slane %v337, 2
    %v339 = vadd.f32 %v337, %v338
    %v340 = vrot.slane %v339, 1
    %v341 = vadd.f32 %v339, %v340
    %v342 = vmul.f32 %v341, 0.125
    %v343 = vmul.f32 %v334, %v334
    %v344 = vsub.f32 %v342, %v343
    %v345 = vmax.f32 %v344, 0.0
    %v346 = vadd.f32 %v345, 1e-05
    %v347 = vrsqrt.pop %v346
    %v348 = vmul.f32 %v326, %v347
    %v349 = vmul.f32 %v334, %v348
    %v350 = vsub.f32 %v327, %v349
    %v351 = vlaneseq
    %v352 = vshrl.u32 %v351, 7
    %v353 = vsub.s32 0, %v352
    %v354 = vrot.slane %v348, %v353
    %v355 = vmul.f32 %v325, %v354
    %v356 = vlaneseq
    %v357 = vshrl.u32 %v356, 7
    %v358 = vsub.s32 0, %v357
    %v359 = vrot.slane %v350, %v358
    %v360 = vadd.f32 %v355, %v359
    %v361 = vld [vmem:[#allocation4 + $0xb] sm:$0x1]
    %v362 = vlaneseq
    %v363 = vshrl.u32 %v362, 7
    %v364 = vsub.s32 0, %v363
    %v365 = vrot.slane %v361, %v364
    %v366 = vmul.f32 %v360, %v365
    %367 = vadd.xlane.f32.xlu0 %v366
    %v368 = vpop.xlane.xlu0 %367
    %v369 = vld [vmem:[#allocation4 + $0xc] sm:$0x1]
    %v370 = vlaneseq
    %v371 = vshrl.u32 %v370, 7
    %v372 = vsub.s32 0, %v371
    %v373 = vrot.slane %v369, %v372
    %v374 = vadd.f32 %v368, %v373
    %vm375 = vcmask 7168
    %376 = vst.msk [vmem:[%s3] sm:$0xff] %vm375, %v374
    // Predicated region
    $region22: #{tpu_custom_call.1} parent=1 // pred_check
      _
    $region23: #{tpu_custom_call.1} parent=1 // pred_check_branch
      %378 = sbr.rel (0) target = $region25
    $region24: #{tpu_custom_call.1} parent=1 // pred_region
      _
    $region25: #{tpu_custom_call.1} parent=1 // pred_fallthru
      _
    // Predicated region
    $region26: #{tpu_custom_call.1} parent=1 // pred_check
      _
    $region27: #{tpu_custom_call.1} parent=1 // pred_check_branch
      %380 = sbr.rel (0) target = $region29
    $region28: #{tpu_custom_call.1} parent=1 // pred_region
      _
    $region29: #{tpu_custom_call.1} parent=1 // pred_fallthru
      _
    %381 = vsyncpa [#allocation3], 1
    %382 = vsyncpa [#allocation5], 1

</llo_original>
